<compile_context>
chip_gen: v6e
topology: v6e:2x2x1
jax: 0.10.0
libtpu: 0.0.40
codegen_flags: <defaults>
</compile_context>

<pallas_src>
import functools

import jax
import jax.numpy as jnp
import numpy as np
from jax.experimental import pallas as pl
from jax.experimental.pallas import tpu as pltpu

SMOOTH = 1e-4
LANES = 128
# Budget for the double-buffered input blocks (2 inputs x 2 pipeline buffers).
_INPUT_BLOCK_BUDGET = 8 * 1024 * 1024


def _dice_kernel(out_ref, tgt_ref, loss_ref, inter_acc, denom_acc, *, n_rows, tb):
    """Grid: (N, num_row_blocks).

    Blocks are (tb, 128) slices (batch dim squeezed) of the (N, R, 128)
    inputs; grid axis 1 is the reduction over feature rows.
    """
    j = pl.program_id(1)
    nj = pl.num_programs(1)

    @pl.when(j == 0)
    def _():
        inter_acc[...] = jnp.zeros_like(inter_acc)
        denom_acc[...] = jnp.zeros_like(denom_acc)

    # Cast only the in-VMEM tile to f32 (HBM traffic stays in native dtype).
    o = jax.nn.sigmoid(out_ref[...].astype(jnp.float32))   # (tb, 128)
    t = tgt_ref[...].astype(jnp.float32)                    # (tb, 128)

    if n_rows % tb != 0:
        # Static ragged tail: mask rows past the end of the feature axis.
        # Mask BOTH o and t so garbage lanes never reach any sum.
        rows = jax.lax.broadcasted_iota(jnp.int32, (tb, LANES), 0) + j * tb
        valid = rows < n_rows
        o = jnp.where(valid, o, 0.0)
        t = jnp.where(valid, t, 0.0)

    # Lane-parallel partial sums; defer the cross-lane reduce to the epilogue.
    inter_acc[...] += jnp.sum(o * t, axis=0, keepdims=True)   # (1, 128)
    denom_acc[...] += jnp.sum(o + t, axis=0, keepdims=True)   # (1, 128)

    @pl.when(j == nj - 1)
    def _():
        inter = jnp.sum(inter_acc[...], keepdims=True)   # (1, 1)
        denom = jnp.sum(denom_acc[...], keepdims=True)   # (1, 1)
        per_sample = 1.0 - 2.0 * (inter + SMOOTH) / (denom + SMOOTH)
        # Lane-dense per-sample output slab; wrapper reads element [0, 0].
        loss_ref[...] = jnp.broadcast_to(per_sample, (8, LANES)).astype(
            loss_ref.dtype)


def _pick_block_rows(n_rows, out_bytes, tgt_bytes):
    """Rows (of 128 lanes) per block so 2 inputs x 2 buffers fit the budget."""
    per_row = 2 * LANES * (out_bytes + tgt_bytes)
    max_rows = max(32, _INPUT_BLOCK_BUDGET // per_row)
    if n_rows <= max_rows:
        return n_rows                       # whole feature axis in one block
    return max(32, (max_rows // 32) * 32)   # multiple of 32: any input dtype


@functools.partial(jax.jit, static_argnames=("block_rows",))
def dice_loss(output, target, block_rows=None):
    """Equivalent of DiceLoss.forward(output, target, type='sigmoid').

    `block_rows` (static, optional) overrides the row-block size; it must be a
    multiple of 8 (32 for sub-32-bit inputs) or equal to the full row count.
    """
    n = output.shape[0]
    d = 1
    for s in output.shape[1:]:
        d *= s

    if target.dtype == jnp.bool_:
        target = target.astype(jnp.float32)

    out2 = output.reshape(n, d)    # free for contiguous NCHW
    tgt2 = target.reshape(n, d)

    if d % LANES != 0:
        # Rare fallback: pad the feature axis to a lane multiple.  Logits are
        # padded with -1e4 so sigmoid(pad) == 0 exactly, targets with 0 — the
        # padded lanes contribute nothing to any sum.
        pad = LANES - d % LANES
        out2 = jnp.pad(out2, ((0, 0), (0, pad)), constant_values=-1e4)
        tgt2 = jnp.pad(tgt2, ((0, 0), (0, pad)), constant_values=0)
    r = out2.shape[1] // LANES

    out3 = out2.reshape(n, r, LANES)
    tgt3 = tgt2.reshape(n, r, LANES)

    if block_rows is None:
        tb = _pick_block_rows(r, out3.dtype.itemsize, tgt3.dtype.itemsize)
    else:
        tb = block_rows
    nb = pl.cdiv(r, tb)

    kernel = functools.partial(_dice_kernel, n_rows=r, tb=tb)

    per_sample = pl.pallas_call(
        kernel,
        out_shape=jax.ShapeDtypeStruct((n, 8, LANES), jnp.float32),
        grid_spec=pltpu.PrefetchScalarGridSpec(
            num_scalar_prefetch=0,
            grid=(n, nb),
            in_specs=[
                pl.BlockSpec((None, tb, LANES), lambda i, j: (i, j, 0)),
                pl.BlockSpec((None, tb, LANES), lambda i, j: (i, j, 0)),
            ],
            out_specs=pl.BlockSpec((None, 8, LANES), lambda i, j: (i, 0, 0)),
            scratch_shapes=[
                pltpu.VMEM((1, LANES), jnp.float32),   # intersection partials
                pltpu.VMEM((1, LANES), jnp.float32),   # (o + t) partials
            ],
        ),
        compiler_params=pltpu.CompilerParams(
            dimension_semantics=("parallel", "arbitrary"),
            vmem_limit_bytes=32 * 1024 * 1024,
        ),
    )(out3, tgt3)

    # Tiny final mean over the batch in plain JAX.
    return jnp.sum(per_sample[:, 0, 0]) / n


def dice_loss_ref(output, target):
    """Pure-JAX reference (mirrors the PyTorch forward exactly)."""
    n = output.shape[0]
    o = jax.nn.sigmoid(output.astype(jnp.float32)).reshape(n, -1)
    t = target.astype(jnp.float32).reshape(n, -1)
    inter = jnp.sum(o * t, axis=1)
    loss = 1.0 - 2.0 * (inter + SMOOTH) / (
        jnp.sum(o, axis=1) + jnp.sum(t, axis=1) + SMOOTH)
    return jnp.sum(loss) / n


if __name__ == "__main__":
    key = jax.random.PRNGKey(0)
    k1, k2, k3, k4 = jax.random.split(key, 4)

    # 1) NCHW logits + binary mask (D = 4*16*16 = 1024, lane-aligned fast path).
    x = jax.random.normal(k1, (2, 4, 16, 16), dtype=jnp.float32)
    tgt = (jax.random.uniform(k2, (2, 4, 16, 16)) > 0.5).astype(jnp.float32)
    loss = dice_loss(x, tgt)
    jax.block_until_ready(loss)
    np.testing.assert_allclose(
        np.asarray(loss), np.asarray(dice_loss_ref(x, tgt)),
        rtol=1e-5, atol=1e-6)

    # 2) bf16 logits streamed in native dtype (f32 accumulation in-kernel).
    xb = x.astype(jnp.bfloat16)
    loss_bf16 = dice_loss(xb, tgt)
    jax.block_until_ready(loss_bf16)
    np.testing.assert_allclose(
        np.asarray(loss_bf16), np.asarray(dice_loss_ref(xb, tgt)),
        rtol=1e-2, atol=1e-3)

    # 3) Feature axis not a multiple of 128 (pad fallback path, D = 300).
    x3 = jax.random.normal(k3, (2, 3, 10, 10), dtype=jnp.float32)
    t3 = (jax.random.uniform(k4, (2, 3, 10, 10)) > 0.5).astype(jnp.float32)
    loss3 = dice_loss(x3, t3)
    jax.block_until_ready(loss3)
    np.testing.assert_allclose(
        np.asarray(loss3), np.asarray(dice_loss_ref(x3, t3)),
        rtol=1e-5, atol=1e-6)

    # 4) Ragged row-block tail (R = 10, block_rows = 8 -> in-kernel mask).
    x4 = jax.random.normal(k1, (2, 4, 20, 16), dtype=jnp.float32)
    t4 = (jax.random.uniform(k2, (2, 4, 20, 16)) > 0.5).astype(jnp.float32)
    loss4 = dice_loss(x4, t4, block_rows=8)
    jax.block_until_ready(loss4)
    np.testing.assert_allclose(
        np.asarray(loss4), np.asarray(dice_loss_ref(x4, t4)),
        rtol=1e-5, atol=1e-6)

    print("KERNEL_OK")
</pallas_src>

<mosaic_0001>
module attributes {stable_mosaic.version = 11 : i64} {
  func.func @_dice_kernel(%arg0: i32, %arg1: i32, %arg2: memref<1x8x128xf32, #tpu.memory_space<vmem>>, %arg3: memref<1x8x128xf32, #tpu.memory_space<vmem>>, %arg4: memref<1x8x128xf32, #tpu.memory_space<vmem>>, %arg5: memref<1x128xf32, #tpu.memory_space<vmem>>, %arg6: memref<1x128xf32, #tpu.memory_space<vmem>>) attributes {dimension_semantics = [#tpu.dimension_semantics<parallel>, #tpu.dimension_semantics<arbitrary>], iteration_bounds = array<i64: 2, 1>, scalar_prefetch = 0 : i64, scratch_operands = 2 : i64, tpu.core_type = #tpu.core_type<tc>, window_params = [{transform_indices = @transform_0, window_bounds = array<i64: 1, 8, 128>}, {transform_indices = @transform_1, window_bounds = array<i64: 1, 8, 128>}, {transform_indices = @transform_2, window_bounds = array<i64: 1, 8, 128>}]} {
    %c0_i32 = arith.constant 0 : i32
    %0 = arith.cmpi eq, %arg1, %c0_i32 : i32
    %1 = arith.extui %0 : i1 to i32
    %c0_i32_0 = arith.constant 0 : i32
    %2 = arith.cmpi ne, %1, %c0_i32_0 : i32
    scf.if %2 {
      %cst_18 = arith.constant 0.000000e+00 : f32
      %27 = vector.broadcast %cst_18 : f32 to vector<1x128xf32>
      %c0_19 = arith.constant 0 : index
      %c0_20 = arith.constant 0 : index
      %28 = vector.load %arg5[%c0_19, %c0_20] : memref<1x128xf32, #tpu.memory_space<vmem>>, vector<1x128xf32>
      tpu.vector_store %arg5[%c0_19, %c0_20], %27 {strides = array<i32>} : memref<1x128xf32, #tpu.memory_space<vmem>>, vector<1x128xf32>,
      %cst_21 = arith.constant 0.000000e+00 : f32
      %29 = vector.broadcast %cst_21 : f32 to vector<1x128xf32>
      %c0_22 = arith.constant 0 : index
      %c0_23 = arith.constant 0 : index
      %30 = vector.load %arg6[%c0_22, %c0_23] : memref<1x128xf32, #tpu.memory_space<vmem>>, vector<1x128xf32>
      tpu.vector_store %arg6[%c0_22, %c0_23], %29 {strides = array<i32>} : memref<1x128xf32, #tpu.memory_space<vmem>>, vector<1x128xf32>,
    } else {
    }
    %c0 = arith.constant 0 : index
    %c0_1 = arith.constant 0 : index
    %c0_2 = arith.constant 0 : index
    %3 = vector.load %arg2[%c0, %c0_1, %c0_2] : memref<1x8x128xf32, #tpu.memory_space<vmem>>, vector<1x8x128xf32>
    %4 = vector.shape_cast %3 : vector<1x8x128xf32> to vector<8x128xf32>
    %5 = arith.negf %4 : vector<8x128xf32>
    %6 = math.exp %5 : vector<8x128xf32>
    %cst = arith.constant 1.000000e+00 : f32
    %7 = vector.broadcast %cst : f32 to vector<8x128xf32>
    %8 = arith.addf %7, %6 : vector<8x128xf32>
    %9 = arith.divf %7, %8 : vector<8x128xf32>
    %c0_3 = arith.constant 0 : index
    %c0_4 = arith.constant 0 : index
    %c0_5 = arith.constant 0 : index
    %10 = vector.load %arg3[%c0_3, %c0_4, %c0_5] : memref<1x8x128xf32, #tpu.memory_space<vmem>>, vector<1x8x128xf32>
    %11 = vector.shape_cast %10 : vector<1x8x128xf32> to vector<8x128xf32>
    %c0_6 = arith.constant 0 : index
    %c0_7 = arith.constant 0 : index
    %12 = vector.load %arg5[%c0_6, %c0_7] : memref<1x128xf32, #tpu.memory_space<vmem>>, vector<1x128xf32>
    %13 = arith.mulf %9, %11 : vector<8x128xf32>
    %cst_8 = arith.constant dense<0.000000e+00> : vector<128xf32>
    %14 = vector.multi_reduction <add>, %13, %cst_8 [0] : vector<8x128xf32> to vector<128xf32>
    %15 = vector.shape_cast %14 : vector<128xf32> to vector<1x128xf32>
    %16 = arith.addf %12, %15 : vector<1x128xf32>
    %c0_9 = arith.constant 0 : index
    %c0_10 = arith.constant 0 : index
    %17 = vector.load %arg5[%c0_9, %c0_10] : memref<1x128xf32, #tpu.memory_space<vmem>>, vector<1x128xf32>
    tpu.vector_store %arg5[%c0_9, %c0_10], %16 {strides = array<i32>} : memref<1x128xf32, #tpu.memory_space<vmem>>, vector<1x128xf32>,
    %c0_11 = arith.constant 0 : index
    %c0_12 = arith.constant 0 : index
    %18 = vector.load %arg6[%c0_11, %c0_12] : memref<1x128xf32, #tpu.memory_space<vmem>>, vector<1x128xf32>
    %19 = arith.addf %9, %11 : vector<8x128xf32>
    %cst_13 = arith.constant dense<0.000000e+00> : vector<128xf32>
    %20 = vector.multi_reduction <add>, %19, %cst_13 [0] : vector<8x128xf32> to vector<128xf32>
    %21 = vector.shape_cast %20 : vector<128xf32> to vector<1x128xf32>
    %22 = arith.addf %18, %21 : vector<1x128xf32>
    %c0_14 = arith.constant 0 : index
    %c0_15 = arith.constant 0 : index
    %23 = vector.load %arg6[%c0_14, %c0_15] : memref<1x128xf32, #tpu.memory_space<vmem>>, vector<1x128xf32>
    tpu.vector_store %arg6[%c0_14, %c0_15], %22 {strides = array<i32>} : memref<1x128xf32, #tpu.memory_space<vmem>>, vector<1x128xf32>,
    %c0_i32_16 = arith.constant 0 : i32
    %24 = arith.cmpi eq, %arg1, %c0_i32_16 : i32
    %25 = arith.extui %24 : i1 to i32
    %c0_i32_17 = arith.constant 0 : i32
    %26 = arith.cmpi ne, %25, %c0_i32_17 : i32
    scf.if %26 {
      %c0_18 = arith.constant 0 : index
      %c0_19 = arith.constant 0 : index
      %27 = vector.load %arg5[%c0_18, %c0_19] : memref<1x128xf32, #tpu.memory_space<vmem>>, vector<1x128xf32>
      %28 = vector.shape_cast %27 : vector<1x128xf32> to vector<1x1x128xf32>
      %cst_20 = arith.constant dense<0.000000e+00> : vector<1xf32>
      %29 = vector.multi_reduction <add>, %28, %cst_20 [1, 2] : vector<1x1x128xf32> to vector<1xf32>
      %30 = vector.shape_cast %29 : vector<1xf32> to vector<1x1x1xf32>
      %31 = vector.extract %30[0, 0, 0] : f32 from vector<1x1x1xf32>
      %32 = vector.broadcast %31 : f32 to vector<1x1xf32>
      %c0_21 = arith.constant 0 : index
      %c0_22 = arith.constant 0 : index
      %33 = vector.load %arg6[%c0_21, %c0_22] : memref<1x128xf32, #tpu.memory_space<vmem>>, vector<1x128xf32>
      %34 = vector.shape_cast %33 : vector<1x128xf32> to vector<1x1x128xf32>
      %cst_23 = arith.constant dense<0.000000e+00> : vector<1xf32>
      %35 = vector.multi_reduction <add>, %34, %cst_23 [1, 2] : vector<1x1x128xf32> to vector<1xf32>
      %36 = vector.shape_cast %35 : vector<1xf32> to vector<1x1x1xf32>
      %37 = vector.extract %36[0, 0, 0] : f32 from vector<1x1x1xf32>
      %38 = vector.broadcast %37 : f32 to vector<1x1xf32>
      %cst_24 = arith.constant 9.99999974E-5 : f32
      %39 = vector.broadcast %cst_24 : f32 to vector<1x1xf32>
      %40 = arith.addf %32, %39 : vector<1x1xf32>
      %cst_25 = arith.constant 2.000000e+00 : f32
      %41 = vector.broadcast %cst_25 : f32 to vector<1x1xf32>
      %42 = arith.mulf %41, %40 : vector<1x1xf32>
      %cst_26 = arith.constant 9.99999974E-5 : f32
      %43 = vector.broadcast %cst_26 : f32 to vector<1x1xf32>
      %44 = arith.addf %38, %43 : vector<1x1xf32>
      %45 = arith.divf %42, %44 : vector<1x1xf32>
      %cst_27 = arith.constant 1.000000e+00 : f32
      %46 = vector.broadcast %cst_27 : f32 to vector<1x1xf32>
      %47 = arith.subf %46, %45 : vector<1x1xf32>
      %48 = vector.shape_cast %47 : vector<1x1xf32> to vector<1x1xf32>
      %49 = vector.broadcast %48 : vector<1x1xf32> to vector<8x128xf32>
      %c0_28 = arith.constant 0 : index
      %c0_29 = arith.constant 0 : index
      %c0_30 = arith.constant 0 : index
      %50 = vector.load %arg4[%c0_28, %c0_29, %c0_30] : memref<1x8x128xf32, #tpu.memory_space<vmem>>, vector<1x8x128xf32>
      %51 = vector.shape_cast %50 : vector<1x8x128xf32> to vector<8x128xf32>
      %52 = vector.shape_cast %49 : vector<8x128xf32> to vector<1x8x128xf32>
      tpu.vector_store %arg4[%c0_28, %c0_29, %c0_30], %52 {strides = array<i32>} : memref<1x8x128xf32, #tpu.memory_space<vmem>>, vector<1x8x128xf32>,
    } else {
    }
    return
  }
  func.func @transform_0(%arg0: i32, %arg1: i32) -> (i32, i32, i32) {
    %c0_i32 = arith.constant 0 : i32
    %c0_i32_0 = arith.constant 0 : i32
    return %arg0, %arg1, %c0_i32 : i32, i32, i32
  }
  func.func @transform_1(%arg0: i32, %arg1: i32) -> (i32, i32, i32) {
    %c0_i32 = arith.constant 0 : i32
    %c0_i32_0 = arith.constant 0 : i32
    return %arg0, %arg1, %c0_i32 : i32, i32, i32
  }
  func.func @transform_2(%arg0: i32, %arg1: i32) -> (i32, i32, i32) {
    %c0_i32 = arith.constant 0 : i32
    %c0_i32_0 = arith.constant 0 : i32
    %c0_i32_1 = arith.constant 0 : i32
    return %arg0, %c0_i32, %c0_i32_0 : i32, i32, i32
  }
}

</mosaic_0001>

<llo_original>
// kernel: dice_loss.1
$region0: #{dice_loss.1}
  #allocation0 [shape = 'u32[]', space=smem, size = 0x4, offset = 0x4, fixed_abs, tag = 'smem constant byte address 0x4 - core index']
  #allocation1 [shape = 'u32[144,128]{1,0:T(1,128)}', space=vmem, size = 0x12000, scoped, tag = 'internal scratch']
  #allocation2 [shape = 'f32[1,128]{1,0:T(1,128)}', space=vmem, size = 0x200, scoped, tag = 'scratch operand']
  #allocation3 [shape = 'f32[1,128]{1,0:T(1,128)}', space=vmem, size = 0x200, scoped, tag = 'scratch operand']
  %s0 = inlined_call_operand.vmem [shape: f32[2,8,128], index: 0, kind: input, shape index: {}]
  %s1 = inlined_call_operand.vmem [shape: f32[2,8,128], index: 1, kind: input, shape index: {}]
  %s2 = inlined_call_operand.vmem [shape: f32[2,8,128], index: 2, kind: output, shape index: {}]
  %s3 = sld [smem:[#allocation0]]
  $region49: #{dice_loss.1} parent=0
    _
  %s5 = ssub.s32 1, %s3
  %s6 = scalar_select 0, %s5, %s3
  loop: start=0, step=1, limit=4
  $region2: #{dice_loss.1} parent=0 // loop_pre_header
    _
  $region3: #{dice_loss.1} parent=0 // loop_header
    %s8 = sphi 0, %s12
    %p9 = scmp.ge.s32.totalorder %s8, 4
    %s15 = sphi 0, %s27
    %s16 = sphi 0, %s23
    %s17 = sphi 0, %s15
    %s18 = sphi 0, %s16
    %s19 = sphi 0, %s17
    %s20 = sphi 0, %s18
    %s32 = sphi 0, %s34
    %s35 = sphi 0, %s32
    %s36 = sphi 0, %s35
    %s52 = sphi 0, %s36
    %s60 = sphi 0, %s62
    %s63 = sphi 0, %s60
    %s64 = sphi 0, %s63
    %s80 = sphi 0, %s64
    %s86 = sphi 0, %s88
    %s89 = sphi 0, %s86
    %s90 = sphi 0, %s89
    %s106 = sphi 0, %s90
  $region4: #{dice_loss.1} parent=0 // loop_header_branch
    %11 = sbr.rel (%p9) target = $region8
  $region5: #{dice_loss.1} parent=0 // loop_body
    %s13 = ssub.s32 %s8, 1
    %s14 = ssub.s32 %s8, 2
    %s21 = sadd.s32 1, %s16
    %p22 = scmp.ge.s32.totalorder %s21, 1
    %s23 = scalar_select %p22, 0, %s21
    %s24 = sadd.s32 1, %s15
    %s25 = scalar_select %p22, %s24, %s15
    %p26 = scmp.ge.s32.totalorder %s25, 2
    %s27 = scalar_select %p26, 0, %s25
    %s28 = ssub.s32 %s15, %s27
    %s29 = ssub.s32 %s16, %s23
    %s30 = sor.u32 %s28, %s29
    %p31 = scmp.eq.s32.totalorder %s30, 0
    %s33 = sadd.s32 %s32, 1
    %s34 = scalar_select %p31, %s32, %s33
    %p37 = pneg %p31
    %p38 = scmp.eq.s32.totalorder %s8, 1
    %p39 = por %p37, %p38
    %p40 = scmp.ne.s32.totalorder %s32, %s35
    %p41 = scmp.eq.s32.totalorder %s8, 0
    %p42 = por %p40, %p41
    %p43 = scmp.ne.s32.totalorder %s32, %s35
    %p44 = scmp.eq.s32.totalorder %s13, 1
    %p45 = por %p43, %p44
    %p46 = scmp.ne.s32.totalorder %s35, %s36
    %p47 = scmp.eq.s32.totalorder %s13, 0
    %p48 = por %p46, %p47
    %p49 = scmp.ne.s32.totalorder %s35, %s36
    %p50 = scmp.eq.s32.totalorder %s14, 1
    %p51 = por %p49, %p50
    %p53 = scmp.ne.s32.totalorder %s36, %s52
    %p54 = scmp.eq.s32.totalorder %s14, 0
    %p55 = por %p53, %p54
    %s56 = ssub.s32 %s15, %s27
    %s57 = ssub.s32 %s16, %s23
    %s58 = sor.u32 %s56, %s57
    %p59 = scmp.eq.s32.totalorder %s58, 0
    %s61 = sadd.s32 %s60, 1
    %s62 = scalar_select %p59, %s60, %s61
    %p65 = pneg %p59
    %p66 = scmp.eq.s32.totalorder %s8, 1
    %p67 = por %p65, %p66
    %p68 = scmp.ne.s32.totalorder %s60, %s63
    %p69 = scmp.eq.s32.totalorder %s8, 0
    %p70 = por %p68, %p69
    %p71 = scmp.ne.s32.totalorder %s60, %s63
    %p72 = scmp.eq.s32.totalorder %s13, 1
    %p73 = por %p71, %p72
    %p74 = scmp.ne.s32.totalorder %s63, %s64
    %p75 = scmp.eq.s32.totalorder %s13, 0
    %p76 = por %p74, %p75
    %p77 = scmp.ne.s32.totalorder %s63, %s64
    %p78 = scmp.eq.s32.totalorder %s14, 1
    %p79 = por %p77, %p78
    %p81 = scmp.ne.s32.totalorder %s64, %s80
    %p82 = scmp.eq.s32.totalorder %s14, 0
    %p83 = por %p81, %p82
    %s84 = ssub.s32 %s15, %s27
    %p85 = scmp.eq.s32.totalorder %s84, 0
    %s87 = sadd.s32 %s86, 1
    %s88 = scalar_select %p85, %s86, %s87
    %p91 = pneg %p85
    %p92 = scmp.eq.s32.totalorder %s8, 1
    %p93 = por %p91, %p92
    %p94 = scmp.ne.s32.totalorder %s86, %s89
    %p95 = scmp.eq.s32.totalorder %s8, 0
    %p96 = por %p94, %p95
    %p97 = scmp.ne.s32.totalorder %s86, %s89
    %p98 = scmp.eq.s32.totalorder %s13, 1
    %p99 = por %p97, %p98
    %p100 = scmp.ne.s32.totalorder %s89, %s90
    %p101 = scmp.eq.s32.totalorder %s13, 0
    %p102 = por %p100, %p101
    %p103 = scmp.ne.s32.totalorder %s89, %s90
    %p104 = scmp.eq.s32.totalorder %s14, 1
    %p105 = por %p103, %p104
    %p107 = scmp.ne.s32.totalorder %s90, %s106
    %p108 = scmp.eq.s32.totalorder %s14, 0
    %p109 = por %p107, %p108
    %p110 = scmp.le.s32.totalorder 1, %s8
    %p111 = scmp.lt.s32.totalorder %s8, 3
    %p112 = pnand %p110, %p111
    %p113 = pneg %p112
    // Predicated region
    $region9: #{dice_loss.1} parent=5 // pred_check
      _
    $region10: #{dice_loss.1} parent=5 // pred_check_branch
      %115 = sbr.rel (%p112) target = $region12
    $region11: #{dice_loss.1} parent=5 // pred_region
      %s116 = ssub.s32 %s8, 1
    $region12: #{dice_loss.1} parent=5 // pred_fallthru
      _
    %p117 = scmp.lt.s32.totalorder %s8, 2
    // Predicated region
    $region13: #{dice_loss.1} parent=5 // pred_check
      %p118 = pneg %p117
    $region14: #{dice_loss.1} parent=5 // pred_check_branch
      %120 = sbr.rel (%p118) target = $region16
    $region15: #{dice_loss.1} parent=5 // pred_region
      // Predicated region
      $region17: #{dice_loss.1} parent=15 // pred_check
        %p121 = pneg %p42
      $region18: #{dice_loss.1} parent=15 // pred_check_branch
        %123 = sbr.rel (%p121) target = $region20
      $region19: #{dice_loss.1} parent=15 // pred_region
        %p124 = scmp.lt.s32.totalorder %s15, 1
        %s125 = scalar_select %p124, %s15, 1
        %p126 = scmp.lt.s32.totalorder %s16, 0
        %s127 = scalar_select %p126, %s16, 0
        %s128 = sadd.s32 %s127, %s125
        %s129 = smul.addr %s128, 8
        %s130 = scalar_lea.vmem %s0, %s129
      $region20: #{dice_loss.1} parent=15 // pred_fallthru
        _
      // Predicated region
      $region21: #{dice_loss.1} parent=15 // pred_check
        %p131 = pneg %p70
      $region22: #{dice_loss.1} parent=15 // pred_check_branch
        %133 = sbr.rel (%p131) target = $region24
      $region23: #{dice_loss.1} parent=15 // pred_region
        %p134 = scmp.lt.s32.totalorder %s15, 1
        %s135 = scalar_select %p134, %s15, 1
        %p136 = scmp.lt.s32.totalorder %s16, 0
        %s137 = scalar_select %p136, %s16, 0
        %s138 = sadd.s32 %s137, %s135
        %s139 = smul.addr %s138, 8
        %s140 = scalar_lea.vmem %s1, %s139
      $region24: #{dice_loss.1} parent=15 // pred_fallthru
        _
    $region16: #{dice_loss.1} parent=5 // pred_fallthru
      _
    %p141 = scmp.le.s32.totalorder 1, %s8
    %p142 = scmp.lt.s32.totalorder %s8, 3
    %p143 = pnand %p141, %p142
    %p144 = pneg %p143
    // Predicated region
    $region25: #{dice_loss.1} parent=5 // pred_check
      _
    $region26: #{dice_loss.1} parent=5 // pred_check_branch
      %146 = sbr.rel (%p143) target = $region28
    $region27: #{dice_loss.1} parent=5 // pred_region
      %s147 = ssub.s32 %s8, 1
      %p148 = scmp.lt.s32.totalorder %s17, 1
      %s149 = scalar_select %p148, %s17, 1
      %p150 = scmp.lt.s32.totalorder %s18, 0
      %s151 = scalar_select %p150, %s18, 0
      %s152 = sadd.s32 %s151, %s149
      %s153 = smul.addr %s152, 8
      %s154 = scalar_lea.vmem %s0, %s153
      %p155 = pneg %p48
      %p156 = pneg %p45
      %p157 = scmp.lt.s32.totalorder %s17, 1
      %s158 = scalar_select %p157, %s17, 1
      %p159 = scmp.lt.s32.totalorder %s18, 0
      %s160 = scalar_select %p159, %s18, 0
      %s161 = sadd.s32 %s160, %s158
      %s162 = smul.addr %s161, 8
      %s163 = scalar_lea.vmem %s1, %s162
      %p164 = pneg %p76
      %p165 = pneg %p73
      %p166 = pneg %p102
      %p167 = pneg %p99
      %p168 = scmp.lt.s32.totalorder %s17, 1
      %s169 = scalar_select %p168, %s17, 1
      %s170 = smul.addr %s169, 8
      %s171 = scalar_lea.vmem %s2, %s170
      %p172 = scmp.lt.s32.totalorder %s17, 1
      %s173 = scalar_select %p172, %s17, 1
      %p174 = scmp.lt.s32.totalorder %s18, 0
      %s175 = scalar_select %p174, %s18, 0
      %s176 = sadd.s32 %s175, %s173
      %s177 = smul.addr %s176, 8
      %s178 = scalar_lea.vmem %s0, %s177
      %p179 = scmp.lt.s32.totalorder %s17, 1
      %s180 = scalar_select %p179, %s17, 1
      %p181 = scmp.lt.s32.totalorder %s18, 0
      %s182 = scalar_select %p181, %s18, 0
      %s183 = sadd.s32 %s182, %s180
      %s184 = smul.addr %s183, 8
      %s185 = scalar_lea.vmem %s1, %s184
      %p186 = scmp.lt.s32.totalorder %s17, 1
      %s187 = scalar_select %p186, %s17, 1
      %s188 = smul.addr %s187, 8
      %s189 = scalar_lea.vmem %s2, %s188
      %p190 = scmp.eq.s32.totalorder %s18, 0
      // Predicated region
      $region29: #{dice_loss.1} parent=27 // pred_check
        %p191 = pneg %p190
      $region30: #{dice_loss.1} parent=27 // pred_check_branch
        %193 = sbr.rel (%p191) target = $region32
      $region31: #{dice_loss.1} parent=27 // pred_region
        %194 = vst [vmem:[#allocation2] sm:$0x1] 0.0
        %195 = vst [vmem:[#allocation3] sm:$0x1] 0.0
      $region32: #{dice_loss.1} parent=27 // pred_fallthru
        _
      %v196 = vld [vmem:[%s178] sm:$0xff]
      %v197 = vxor.u32 %v196, 2147483648
      %v198 = vmul.f32 %v197, 1.442695
      %v199 = vpow.pop %v198
      %v200 = vadd.f32 %v199, 1.0
      %v201 = vrcp.pop %v200
      %v202 = vmul.f32 1.0, %v201
      %v203 = vld [vmem:[%s185] sm:$0xff]
      %v204 = vld [vmem:[#allocation2] sm:$0x1]
      %v205 = vmul.f32 %v202, %v203
      %v206 = vrot.slane %v205, 4
      %v207 = vadd.f32 %v205, %v206
      %v208 = vrot.slane %v207, 2
      %v209 = vadd.f32 %v207, %v208
      %v210 = vrot.slane %v209, 1
      %v211 = vadd.f32 %v209, %v210
      %v212 = vadd.f32 %v204, %v211
      %213 = vst [vmem:[#allocation2] sm:$0x1] %v212
      %v214 = vld [vmem:[#allocation3] sm:$0x1]
      %v215 = vadd.f32 %v202, %v203
      %v216 = vrot.slane %v215, 4
      %v217 = vadd.f32 %v215, %v216
      %v218 = vrot.slane %v217, 2
      %v219 = vadd.f32 %v217, %v218
      %v220 = vrot.slane %v219, 1
      %v221 = vadd.f32 %v219, %v220
      %v222 = vadd.f32 %v214, %v221
      %223 = vst [vmem:[#allocation3] sm:$0x1] %v222
      // Predicated region
      $region33: #{dice_loss.1} parent=27 // pred_check
        %p224 = pneg %p190
      $region34: #{dice_loss.1} parent=27 // pred_check_branch
        %226 = sbr.rel (%p224) target = $region36
      $region35: #{dice_loss.1} parent=27 // pred_region
        %v227 = vld [vmem:[#allocation2] sm:$0x1]
        %vm228 = vcmask 1040384
        %v229 = vsel %vm228, %v227, 0.0
        %230 = vadd.xlane.f32.xlu0 %v229
        %v231 = vpop.xlane.xlu0 %230
        %v232 = vrot.slane %v231, 4
        %v233 = vadd.f32 %v231, %v232
        %v234 = vrot.slane %v233, 2
        %v235 = vadd.f32 %v233, %v234
        %v236 = vrot.slane %v235, 1
        %v237 = vadd.f32 %v235, %v236
        %s238 = vtos %v237
        %v239 = vstv %s238
        %v240 = vld [vmem:[#allocation3] sm:$0x1]
        %v241 = vsel %vm228, %v240, 0.0
        %242 = vadd.xlane.f32.xlu0 %v241
        %v243 = vpop.xlane.xlu0 %242
        %v244 = vrot.slane %v243, 4
        %v245 = vadd.f32 %v243, %v244
        %v246 = vrot.slane %v245, 2
        %v247 = vadd.f32 %v245, %v246
        %v248 = vrot.slane %v247, 1
        %v249 = vadd.f32 %v247, %v248
        %s250 = vtos %v249
        %v251 = vstv %s250
        %v252 = vadd.f32 %v239, 0.0001
        %v253 = vmul.f32 %v252, 2.0
        %v254 = vadd.f32 %v251, 0.0001
        %v255 = vrcp.pop %v254
        %v256 = vmul.f32 %v253, %v255
        %v257 = vsub.f32 1.0, %v256
        %258 = vst [vmem:[%s189] sm:$0xff] %v257
      $region36: #{dice_loss.1} parent=27 // pred_fallthru
        _
      %p259 = scmp.lt.s32.totalorder %s17, 1
      %s260 = scalar_select %p259, %s17, 1
      %s261 = smul.addr %s260, 8
      %s262 = scalar_lea.vmem %s2, %s261
      // Predicated region
      $region37: #{dice_loss.1} parent=27 // pred_check
        %p263 = pneg %p99
      $region38: #{dice_loss.1} parent=27 // pred_check_branch
        %265 = sbr.rel (%p263) target = $region40
      $region39: #{dice_loss.1} parent=27 // pred_region
        _
      $region40: #{dice_loss.1} parent=27 // pred_fallthru
        _
    $region28: #{dice_loss.1} parent=5 // pred_fallthru
      _
    %p266 = scmp.le.s32.totalorder 2, %s8
    // Predicated region
    $region41: #{dice_loss.1} parent=5 // pred_check
      %p267 = pneg %p266
    $region42: #{dice_loss.1} parent=5 // pred_check_branch
      %269 = sbr.rel (%p267) target = $region44
    $region43: #{dice_loss.1} parent=5 // pred_region
      %s270 = ssub.s32 %s8, 2
      // Predicated region
      $region45: #{dice_loss.1} parent=43 // pred_check
        %p271 = pneg %p105
      $region46: #{dice_loss.1} parent=43 // pred_check_branch
        %273 = sbr.rel (%p271) target = $region48
      $region47: #{dice_loss.1} parent=43 // pred_region
        %p274 = scmp.lt.s32.totalorder %s19, 1
        %s275 = scalar_select %p274, %s19, 1
        %s276 = smul.addr %s275, 8
        %s277 = scalar_lea.vmem %s2, %s276
      $region48: #{dice_loss.1} parent=43 // pred_fallthru
        _
    $region44: #{dice_loss.1} parent=5 // pred_fallthru
      _
  $region6: #{dice_loss.1} parent=0 // loop_footer
    %s12 = sadd.s32 1, %s8
  $region7: #{dice_loss.1} parent=0 // loop_footer_branch
    %7 = sbr.rel target = $region3
  $region8: #{dice_loss.1} parent=0 // loop_exit
    _

</llo_original>
